<compile_context>
chip_gen: v6e
topology: v6e:2x2x1
jax: 0.10.0
libtpu: 0.0.40
codegen_flags: <defaults>
</compile_context>

<pallas_src>
import functools

import jax
import jax.numpy as jnp
from jax.experimental import pallas as pl
from jax.experimental.pallas import tpu as pltpu


# ----------------------------- kernels --------------------------------------


def linear_kernel_single(x_ref, w_ref, b_ref, o_ref):
    # Single K step: no accumulator scratch, no zero-init, direct store.
    acc = jnp.dot(x_ref[...], w_ref[...], preferred_element_type=jnp.float32)
    o_ref[...] = (acc + b_ref[...].astype(jnp.float32)).astype(o_ref.dtype)


def linear_kernel_acc(x_ref, w_ref, b_ref, o_ref, acc_ref):
    # K-tiled path: f32 VMEM accumulator resident across the K grid axis.
    k_idx = pl.program_id(2)

    @pl.when(k_idx == 0)
    def _():
        acc_ref[...] = jnp.zeros_like(acc_ref)

    acc_ref[...] += jnp.dot(
        x_ref[...], w_ref[...], preferred_element_type=jnp.float32
    )

    @pl.when(k_idx == pl.num_programs(2) - 1)
    def _():
        o_ref[...] = (acc_ref[...] + b_ref[...].astype(jnp.float32)).astype(
            o_ref.dtype
        )


# ----------------------------- tiling helpers --------------------------------


def _round_up(x, mult):
    return ((x + mult - 1) // mult) * mult


def _tpu_hw_info():
    """(vmem_capacity_bytes, num_tensorcores_per_chip) with safe fallbacks."""
    cap = 64 * 1024 * 1024  # conservative fallback = v7x per-TC VMEM
    num_tc = 1
    try:
        cap = int(pltpu.get_tpu_info().vmem_capacity_bytes)
    except Exception:
        pass
    try:
        kind = jax.devices()[0].device_kind.lower()
        if "v7" in kind:  # v7x: 2 TensorCores per chip
            num_tc = 2
    except Exception:
        pass
    return cap, num_tc


def _choose_tiling(m, k, n_pad, itemsize, vmem_budget, num_tc):
    """Pick (tm, tn, tk, m_pad, k_pad)."""
    # Dtype-dependent sublane multiple for the row (second-to-last) axis.
    sub = {4: 8, 2: 16, 1: 32}.get(itemsize, 8)

    # N tile: lane-dense (multiple of 128), capped at 512, must divide n_pad.
    if n_pad <= 512:
        tn = n_pad
    else:
        tn = 128
        for cand in (512, 256):
            if n_pad % cand == 0:
                tn = cand
                break

    m_rounded = _round_up(max(m, sub), sub)

    def vmem_bytes(tm_, tk_, with_acc):
        b = (
            2 * tm_ * tk_ * itemsize  # X blocks (double-buffered)
            + 2 * tk_ * tn * itemsize  # W blocks (double-buffered)
            + 2 * tm_ * tn * itemsize  # O blocks (double-buffered)
            + 2 * tn * itemsize  # bias block
        )
        if with_acc:
            b += tm_ * tn * 4  # f32 accumulator scratch
        return b

    # Keep the full K axis resident per tile (single K step) when a decent
    # row tile still fits the budget; otherwise tile K (512-wide, padded).
    tm_probe = min(256, _round_up(m_rounded, sub))
    if vmem_bytes(max(tm_probe, sub), k, with_acc=False) <= vmem_budget:
        tk, k_pad = k, k
        with_acc = False
    else:
        tk = 512
        with_acc = True
        while tk > 128 and vmem_bytes(sub, tk, True) > vmem_budget:
            tk //= 2
        k_pad = _round_up(k, tk)

    # Grow tm as large as the budget allows (cap 2048), multiple of `sub`.
    tm = min(2048, _round_up(m_rounded, sub))
    while tm > sub and vmem_bytes(tm, tk, with_acc) > vmem_budget:
        tm = max(sub, _round_up(tm // 2, sub))

    # Only force >=2 row tiles on multi-TensorCore chips so both cores get
    # work via the "parallel" grid axes; on 1-TC chips the split is pure
    # per-step overhead.
    if num_tc >= 2 and m_rounded >= 2 * sub and pl.cdiv(m_rounded, tm) < 2:
        tm = max(sub, _round_up(pl.cdiv(m_rounded, 2), sub))

    m_pad = _round_up(m_rounded, tm)
    return tm, tn, tk, m_pad, k_pad


# ----------------------------- forward wrapper -------------------------------


@functools.partial(jax.jit, static_argnames=())
def mlp_layer2_forward(x, weight, bias):
    """Pallas implementation of MLP_Layer2.forward (a single nn.Linear).

    x:      (..., in_dim)
    weight: (out_dim, in_dim)   -- PyTorch nn.Linear convention
    bias:   (out_dim,)
    returns (..., out_dim)
    """
    *lead, k = x.shape
    out_dim = weight.shape[0]
    m = 1
    for d in lead:
        m *= d

    dtype = x.dtype
    itemsize = jnp.dtype(dtype).itemsize

    # Lane-dense output: pad out_dim to a multiple of 128 (padded columns are
    # exact zeros from zero-padded weight rows/bias and are sliced off below).
    n_pad = _round_up(out_dim, 128)

    vmem_cap, num_tc = _tpu_hw_info()
    budget = int(vmem_cap * 0.55)        # tile-sizing budget
    vmem_limit = int(vmem_cap * 0.75)    # scoped-VMEM limit passed to Mosaic

    tm, tn, tk, m_pad, k_pad = _choose_tiling(
        m, k, n_pad, itemsize, budget, num_tc
    )

    # Activation: flatten leading dims; zero-pad M / K so tiles divide evenly.
    # TODO(synk): for very large M the jnp.pad + final slice are two extra HBM
    # passes; a masked last-row-tile store (pltpu.store(mask=...)) would avoid
    # them at the cost of a scalar-prefetch row count.
    x2 = x.reshape(m, k)
    if m_pad != m or k_pad != k:
        x2 = jnp.pad(x2, ((0, m_pad - m), (0, k_pad - k)))

    # Weight: one-time wrapper-side pad + transpose to (K, N) so the in-kernel
    # dot is the native MXU layout (no per-tile transpose of the weight tile).
    w = weight
    if n_pad != out_dim or k_pad != k:
        w = jnp.pad(w, ((0, n_pad - out_dim), (0, k_pad - k)))
    w = w.T  # (k_pad, n_pad)

    b2 = bias
    if n_pad != out_dim:
        b2 = jnp.pad(b2, ((0, n_pad - out_dim),))
    b2 = b2.reshape(1, n_pad)

    nm, nn, nk = m_pad // tm, n_pad // tn, k_pad // tk
    grid = (nm, nn, nk)

    if nk == 1:
        kernel = linear_kernel_single
        scratch = []
    else:
        kernel = linear_kernel_acc
        scratch = [pltpu.VMEM((tm, tn), jnp.float32)]

    out = pl.pallas_call(
        kernel,
        out_shape=jax.ShapeDtypeStruct((m_pad, n_pad), dtype),
        grid_spec=pltpu.PrefetchScalarGridSpec(
            num_scalar_prefetch=0,
            grid=grid,
            in_specs=[
                pl.BlockSpec((tm, tk), lambda i, j, kk: (i, kk)),   # X
                pl.BlockSpec((tk, tn), lambda i, j, kk: (kk, j)),   # W (K, N)
                pl.BlockSpec((1, tn), lambda i, j, kk: (0, j)),     # bias
            ],
            out_specs=pl.BlockSpec((tm, tn), lambda i, j, kk: (i, j)),
            scratch_shapes=scratch,
        ),
        compiler_params=pltpu.CompilerParams(
            # Row and column tiles are independent (megacore-shardable on
            # 2-TC chips); K is the reduction axis.
            dimension_semantics=("parallel", "parallel", "arbitrary"),
            vmem_limit_bytes=vmem_limit,
        ),
    )(x2, w, b2)

    out = out[:m, :out_dim]
    return out.reshape(*lead, out_dim)


def init_mlp_layer2_params(key, in_dim, out_dim, dtype=jnp.float32):
    """Deterministic synthetic init matching nn.Linear(in_dim, out_dim) shapes."""
    k_w, k_b = jax.random.split(key)
    bound = 1.0 / jnp.sqrt(jnp.asarray(in_dim, dtype=jnp.float32))
    weight = jax.random.uniform(k_w, (out_dim, in_dim), dtype, -bound, bound)
    bias = jax.random.uniform(k_b, (out_dim,), dtype, -bound, bound)
    return weight, bias


if __name__ == "__main__":
    # Small shapes consistent with MLP_Layer2: Linear(in_dim, out_dim).
    in_dim, out_dim = 48, 32
    batch, seq = 2, 63  # M = 126 rows -> exercises row/column padding paths

    key = jax.random.PRNGKey(0)
    k_x, k_p = jax.random.split(key)
    x = jax.random.normal(k_x, (batch, seq, in_dim), jnp.float32)
    weight, bias = init_mlp_layer2_params(k_p, in_dim, out_dim)

    y = mlp_layer2_forward(x, weight, bias)
    jax.block_until_ready(y)

    # Correctness check against plain JAX reference of nn.Linear semantics.
    y_ref = x @ weight.T + bias
    assert y.shape == (batch, seq, out_dim)
    assert jnp.allclose(y, y_ref, atol=1e-5, rtol=1e-5)

    print("KERNEL_OK")
</pallas_src>

<mosaic_0001>
module attributes {stable_mosaic.version = 11 : i64} {
  func.func @linear_kernel_single(%arg0: i32, %arg1: i32, %arg2: i32, %arg3: memref<128x48xf32, #tpu.memory_space<vmem>>, %arg4: memref<48x128xf32, #tpu.memory_space<vmem>>, %arg5: memref<1x128xf32, #tpu.memory_space<vmem>>, %arg6: memref<128x128xf32, #tpu.memory_space<vmem>>) attributes {dimension_semantics = [#tpu.dimension_semantics<parallel>, #tpu.dimension_semantics<parallel>, #tpu.dimension_semantics<arbitrary>], iteration_bounds = array<i64: 1, 1, 1>, scalar_prefetch = 0 : i64, scratch_operands = 0 : i64, tpu.core_type = #tpu.core_type<tc>, window_params = [{transform_indices = @transform_0, window_bounds = array<i64: 128, 48>}, {transform_indices = @transform_1, window_bounds = array<i64: 48, 128>}, {transform_indices = @transform_2, window_bounds = array<i64: 1, 128>}, {transform_indices = @transform_3, window_bounds = array<i64: 128, 128>}]} {
    %c0 = arith.constant 0 : index
    %c0_0 = arith.constant 0 : index
    %0 = vector.load %arg3[%c0, %c0_0] : memref<128x48xf32, #tpu.memory_space<vmem>>, vector<128x48xf32>
    %c0_1 = arith.constant 0 : index
    %c0_2 = arith.constant 0 : index
    %1 = vector.load %arg4[%c0_1, %c0_2] : memref<48x128xf32, #tpu.memory_space<vmem>>, vector<48x128xf32>
    %cst = arith.constant dense<0.000000e+00> : vector<128x128xf32>
    %2 = tpu.matmul %0, %1, %cst {dimension_numbers = #tpu.dot_dimension_numbers<[1], [0], [0], [1], [0, 0, 1, 1], [], []>} : vector<128x48xf32>, vector<48x128xf32>, vector<128x128xf32> -> vector<128x128xf32>
    %c0_3 = arith.constant 0 : index
    %c0_4 = arith.constant 0 : index
    %3 = vector.load %arg5[%c0_3, %c0_4] : memref<1x128xf32, #tpu.memory_space<vmem>>, vector<1x128xf32>
    %4 = vector.broadcast %3 : vector<1x128xf32> to vector<128x128xf32>
    %5 = arith.addf %2, %4 : vector<128x128xf32>
    %c0_5 = arith.constant 0 : index
    %c0_6 = arith.constant 0 : index
    %6 = vector.load %arg6[%c0_5, %c0_6] : memref<128x128xf32, #tpu.memory_space<vmem>>, vector<128x128xf32>
    tpu.vector_store %arg6[%c0_5, %c0_6], %5 {strides = array<i32>} : memref<128x128xf32, #tpu.memory_space<vmem>>, vector<128x128xf32>,
    return
  }
  func.func @transform_0(%arg0: i32, %arg1: i32, %arg2: i32) -> (i32, i32) {
    %c0_i32 = arith.constant 0 : i32
    return %arg0, %arg2 : i32, i32
  }
  func.func @transform_1(%arg0: i32, %arg1: i32, %arg2: i32) -> (i32, i32) {
    %c0_i32 = arith.constant 0 : i32
    return %arg2, %arg1 : i32, i32
  }
  func.func @transform_2(%arg0: i32, %arg1: i32, %arg2: i32) -> (i32, i32) {
    %c0_i32 = arith.constant 0 : i32
    %c0_i32_0 = arith.constant 0 : i32
    return %c0_i32, %arg1 : i32, i32
  }
  func.func @transform_3(%arg0: i32, %arg1: i32, %arg2: i32) -> (i32, i32) {
    %c0_i32 = arith.constant 0 : i32
    return %arg0, %arg1 : i32, i32
  }
}

</mosaic_0001>

<llo_original>
// kernel: mlp_layer2_forward.1
$region0: #{mlp_layer2_forward.1}
  #allocation0 [shape = 'u32[]', space=smem, size = 0x4, offset = 0x4, fixed_abs, tag = 'smem constant byte address 0x4 - core index']
  #allocation1 [shape = 'u32[144,128]{1,0:T(1,128)}', space=vmem, size = 0x12000, scoped, tag = 'internal scratch']
  %s0 = inlined_call_operand.vmem [shape: f32[128,48], index: 0, kind: input, shape index: {}]
  %s1 = inlined_call_operand.vmem [shape: f32[48,128], index: 1, kind: input, shape index: {}]
  %s2 = inlined_call_operand.vmem [shape: f32[1,128], index: 2, kind: input, shape index: {}]
  %s3 = inlined_call_operand.vmem [shape: f32[128,128], index: 3, kind: output, shape index: {}]
  %s4 = sld [smem:[#allocation0]]
  $region22: #{mlp_layer2_forward.1} parent=0
    _
  %s6 = ssub.s32 1, %s4
  %s7 = scalar_select 0, %s6, %s4
  // Predicated region
  $region2: #{mlp_layer2_forward.1} parent=0 // pred_check
    _
  $region3: #{mlp_layer2_forward.1} parent=0 // pred_check_branch
    %9 = sbr.rel (0) target = $region5
  $region4: #{mlp_layer2_forward.1} parent=0 // pred_region
    _
  $region5: #{mlp_layer2_forward.1} parent=0 // pred_fallthru
    _
  // Predicated region
  $region6: #{mlp_layer2_forward.1} parent=0 // pred_check
    _
  $region7: #{mlp_layer2_forward.1} parent=0 // pred_check_branch
    %11 = sbr.rel (0) target = $region9
  $region8: #{mlp_layer2_forward.1} parent=0 // pred_region
    _
  $region9: #{mlp_layer2_forward.1} parent=0 // pred_fallthru
    _
  // Predicated region
  $region10: #{mlp_layer2_forward.1} parent=0 // pred_check
    _
  $region11: #{mlp_layer2_forward.1} parent=0 // pred_check_branch
    %13 = sbr.rel (0) target = $region13
  $region12: #{mlp_layer2_forward.1} parent=0 // pred_region
    _
  $region13: #{mlp_layer2_forward.1} parent=0 // pred_fallthru
    _
  %v14 = vld [vmem:[%s0] sm:$0xff]
  %v15 = vld [vmem:[%s0 + $0x8] sm:$0xff]
  %v16 = vld [vmem:[%s0 + $0x10] sm:$0xff]
  %v17 = vld [vmem:[%s0 + $0x18] sm:$0xff]
  %v18 = vld [vmem:[%s0 + $0x20] sm:$0xff]
  %v19 = vld [vmem:[%s0 + $0x28] sm:$0xff]
  %v20 = vld [vmem:[%s0 + $0x30] sm:$0xff]
  %v21 = vld [vmem:[%s0 + $0x38] sm:$0xff]
  %v22 = vld [vmem:[%s0 + $0x40] sm:$0xff]
  %v23 = vld [vmem:[%s0 + $0x48] sm:$0xff]
  %v24 = vld [vmem:[%s0 + $0x50] sm:$0xff]
  %v25 = vld [vmem:[%s0 + $0x58] sm:$0xff]
  %v26 = vld [vmem:[%s0 + $0x60] sm:$0xff]
  %v27 = vld [vmem:[%s0 + $0x68] sm:$0xff]
  %v28 = vld [vmem:[%s0 + $0x70] sm:$0xff]
  %v29 = vld [vmem:[%s0 + $0x78] sm:$0xff]
  %v30 = vld [vmem:[%s1] sm:$0xff]
  %v31 = vld [vmem:[%s1 + $0x8] sm:$0xff]
  %v32 = vld [vmem:[%s1 + $0x10] sm:$0xff]
  %v33 = vld [vmem:[%s1 + $0x18] sm:$0xff]
  %v34 = vld [vmem:[%s1 + $0x20] sm:$0xff]
  %v35 = vld [vmem:[%s1 + $0x28] sm:$0xff]
  %v36 = vld [vmem:[%s2] sm:$0x1]
  %v38 = vlaneseq
  %v39 = vshrl.u32 %v38, 7
  %v40 = vsub.s32 0, %v39
  %v41 = vrot.slane %v36, %v40
  %vm43 = vcmask 392192
  %v45 = vsel %vm43, %v14, 0
  %v48 = vsel %vm43, %v15, 0
  %v51 = vsel %vm43, %v16, 0
  %v54 = vsel %vm43, %v17, 0
  %v57 = vsel %vm43, %v18, 0
  %v60 = vsel %vm43, %v19, 0
  %v63 = vsel %vm43, %v20, 0
  %v66 = vsel %vm43, %v21, 0
  %v69 = vsel %vm43, %v22, 0
  %v72 = vsel %vm43, %v23, 0
  %v75 = vsel %vm43, %v24, 0
  %v78 = vsel %vm43, %v25, 0
  %v81 = vsel %vm43, %v26, 0
  %v84 = vsel %vm43, %v27, 0
  %v87 = vsel %vm43, %v28, 0
  %v90 = vsel %vm43, %v29, 0
  %92 = vmatprep.subr.mxu0 0.0
  %93 = vmatpush1.msra.mxu0 0.0
  %94 = vmatprep.subr.mxu0 0.0
  %95 = vmatpush1.msra.mxu0 0.0
  %96 = vmatprep.subr.mxu0 0.0
  %97 = vmatpush1.msra.mxu0 0.0
  %98 = vmatprep.subr.mxu0 0.0
  %99 = vmatpush1.msra.mxu0 0.0
  %100 = vmatprep.subr.mxu0 0.0
  %101 = vmatpush1.msra.mxu0 0.0
  %102 = vmatprep.subr.mxu0 0.0
  %103 = vmatpush1.msra.mxu0 0.0
  %104 = vmatprep.subr.mxu0 0.0
  %105 = vmatpush1.msra.mxu0 0.0
  %106 = vmatprep.subr.mxu0 0.0
  %107 = vmatpush1.msra.mxu0 0.0
  %108 = vmatprep.subr.mxu0 0.0
  %109 = vmatpush1.msra.mxu0 0.0
  %110 = vmatprep.subr.mxu0 0.0
  %111 = vmatpush1.msra.mxu0 0.0
  %112 = vmatprep.subr.mxu0 0.0
  %113 = vmatpush1.msra.mxu0 %v35
  %114 = vmatprep.subr.mxu0 0.0
  %115 = vmatpush1.msra.mxu0 %v34
  %116 = vmatprep.subr.mxu0 0.0
  %117 = vmatpush1.msra.mxu0 %v33
  %118 = vmatprep.subr.mxu0 0.0
  %119 = vmatpush1.msra.mxu0 %v32
  %120 = vmatprep.subr.mxu0 0.0
  %121 = vmatpush1.msra.mxu0 %v31
  %122 = vmatprep.subr.mxu0 0.0
  %123 = vmatpush1.msra.mxu0 %v30
  %124 = vmatprep.subr.mxu0 0.0
  %125 = vmatpush2.msra.mxu0 0.0
  %126 = vmatprep.subr.mxu0 0.0
  %127 = vmatpush2.msra.mxu0 0.0
  %128 = vmatprep.subr.mxu0 0.0
  %129 = vmatpush2.msra.mxu0 0.0
  %130 = vmatprep.subr.mxu0 0.0
  %131 = vmatpush2.msra.mxu0 0.0
  %132 = vmatprep.subr.mxu0 0.0
  %133 = vmatpush2.msra.mxu0 0.0
  %134 = vmatprep.subr.mxu0 0.0
  %135 = vmatpush2.msra.mxu0 0.0
  %136 = vmatprep.subr.mxu0 0.0
  %137 = vmatpush2.msra.mxu0 0.0
  %138 = vmatprep.subr.mxu0 0.0
  %139 = vmatpush2.msra.mxu0 0.0
  %140 = vmatprep.subr.mxu0 0.0
  %141 = vmatpush2.msra.mxu0 0.0
  %142 = vmatprep.subr.mxu0 0.0
  %143 = vmatpush2.msra.mxu0 0.0
  %144 = vmatprep.subr.mxu0 0.0
  %145 = vmatpush2.msra.mxu0 0.0
  %146 = vmatprep.subr.mxu0 0.0
  %147 = vmatpush2.msra.mxu0 0.0
  %148 = vmatprep.subr.mxu0 0.0
  %149 = vmatpush2.msra.mxu0 0.0
  %150 = vmatprep.subr.mxu0 0.0
  %151 = vmatpush2.msra.mxu0 0.0
  %152 = vmatprep.subr.mxu0 0.0
  %153 = vmatpush2.msra.mxu0 0.0
  %154 = vmatprep.subr.mxu0 0.0
  %155 = vmatpush2.msra.mxu0 0.0
  %156 = vmatprep.mubr.f32.mxu0 0.0
  %157 = vmatmul.mubr.f32.gmra.mxu0 %v45
  %v158 = vpop.f32.mrf.mxu0
  %v159 = vadd.f32 %v41, %v158
  %v160 = vpop.f32.mrf.mxu0
  %161 = vmatprep.mubr.f32.mxu0 0.0
  %162 = vmatmul.mubr.f32.gmra.mxu0 %v48
  %v163 = vpop.f32.mrf.mxu0
  %v164 = vadd.f32 %v41, %v163
  %v165 = vpop.f32.mrf.mxu0
  %166 = vmatprep.mubr.f32.mxu0 0.0
  %167 = vmatmul.mubr.f32.gmra.mxu0 %v51
  %v168 = vpop.f32.mrf.mxu0
  %v169 = vadd.f32 %v41, %v168
  %v170 = vpop.f32.mrf.mxu0
  %171 = vmatprep.mubr.f32.mxu0 0.0
  %172 = vmatmul.mubr.f32.gmra.mxu0 %v54
  %v173 = vpop.f32.mrf.mxu0
  %v174 = vadd.f32 %v41, %v173
  %v175 = vpop.f32.mrf.mxu0
  %176 = vmatprep.mubr.f32.mxu0 0.0
  %177 = vmatmul.mubr.f32.gmra.mxu0 %v57
  %v178 = vpop.f32.mrf.mxu0
  %v179 = vadd.f32 %v41, %v178
  %v180 = vpop.f32.mrf.mxu0
  %181 = vmatprep.mubr.f32.mxu0 0.0
  %182 = vmatmul.mubr.f32.gmra.mxu0 %v60
  %v183 = vpop.f32.mrf.mxu0
  %v184 = vadd.f32 %v41, %v183
  %v185 = vpop.f32.mrf.mxu0
  %186 = vmatprep.mubr.f32.mxu0 0.0
  %187 = vmatmul.mubr.f32.gmra.mxu0 %v63
  %v188 = vpop.f32.mrf.mxu0
  %v189 = vadd.f32 %v41, %v188
  %v190 = vpop.f32.mrf.mxu0
  %191 = vmatprep.mubr.f32.mxu0 0.0
  %192 = vmatmul.mubr.f32.gmra.mxu0 %v66
  %v193 = vpop.f32.mrf.mxu0
  %v194 = vadd.f32 %v41, %v193
  %v195 = vpop.f32.mrf.mxu0
  %196 = vmatprep.mubr.f32.mxu0 0.0
  %197 = vmatmul.mubr.f32.gmra.mxu0 %v69
  %v198 = vpop.f32.mrf.mxu0
  %v199 = vadd.f32 %v41, %v198
  %v200 = vpop.f32.mrf.mxu0
  %201 = vmatprep.mubr.f32.mxu0 0.0
  %202 = vmatmul.mubr.f32.gmra.mxu0 %v72
  %v203 = vpop.f32.mrf.mxu0
  %v204 = vadd.f32 %v41, %v203
  %v205 = vpop.f32.mrf.mxu0
  %206 = vmatprep.mubr.f32.mxu0 0.0
  %207 = vmatmul.mubr.f32.gmra.mxu0 %v75
  %v208 = vpop.f32.mrf.mxu0
  %v209 = vadd.f32 %v41, %v208
  %v210 = vpop.f32.mrf.mxu0
  %211 = vmatprep.mubr.f32.mxu0 0.0
  %212 = vmatmul.mubr.f32.gmra.mxu0 %v78
  %v213 = vpop.f32.mrf.mxu0
  %v214 = vadd.f32 %v41, %v213
  %v215 = vpop.f32.mrf.mxu0
  %216 = vmatprep.mubr.f32.mxu0 0.0
  %217 = vmatmul.mubr.f32.gmra.mxu0 %v81
  %v218 = vpop.f32.mrf.mxu0
  %v219 = vadd.f32 %v41, %v218
  %v220 = vpop.f32.mrf.mxu0
  %221 = vmatprep.mubr.f32.mxu0 0.0
  %222 = vmatmul.mubr.f32.gmra.mxu0 %v84
  %v223 = vpop.f32.mrf.mxu0
  %v224 = vadd.f32 %v41, %v223
  %v225 = vpop.f32.mrf.mxu0
  %226 = vmatprep.mubr.f32.mxu0 0.0
  %227 = vmatmul.mubr.f32.gmra.mxu0 %v87
  %v228 = vpop.f32.mrf.mxu0
  %v229 = vadd.f32 %v41, %v228
  %v230 = vpop.f32.mrf.mxu0
  %231 = vmatprep.mubr.f32.mxu0 0.0
  %232 = vmatmul.mubr.f32.gmra.mxu0 %v90
  %v233 = vpop.f32.mrf.mxu0
  %v234 = vadd.f32 %v41, %v233
  %v235 = vpop.f32.mrf.mxu0
  %236 = vdwg.mxu0
  %237 = vst [vmem:[%s3] sm:$0xff] %v159
  %238 = vst [vmem:[%s3 + $0x8] sm:$0xff] %v164
  %239 = vst [vmem:[%s3 + $0x10] sm:$0xff] %v169
  %240 = vst [vmem:[%s3 + $0x18] sm:$0xff] %v174
  %241 = vst [vmem:[%s3 + $0x20] sm:$0xff] %v179
  %242 = vst [vmem:[%s3 + $0x28] sm:$0xff] %v184
  %243 = vst [vmem:[%s3 + $0x30] sm:$0xff] %v189
  %244 = vst [vmem:[%s3 + $0x38] sm:$0xff] %v194
  %245 = vst [vmem:[%s3 + $0x40] sm:$0xff] %v199
  %246 = vst [vmem:[%s3 + $0x48] sm:$0xff] %v204
  %247 = vst [vmem:[%s3 + $0x50] sm:$0xff] %v209
  %248 = vst [vmem:[%s3 + $0x58] sm:$0xff] %v214
  %249 = vst [vmem:[%s3 + $0x60] sm:$0xff] %v219
  %250 = vst [vmem:[%s3 + $0x68] sm:$0xff] %v224
  %251 = vst [vmem:[%s3 + $0x70] sm:$0xff] %v229
  %252 = vst [vmem:[%s3 + $0x78] sm:$0xff] %v234
  // Predicated region
  $region14: #{mlp_layer2_forward.1} parent=0 // pred_check
    _
  $region15: #{mlp_layer2_forward.1} parent=0 // pred_check_branch
    %254 = sbr.rel (0) target = $region17
  $region16: #{mlp_layer2_forward.1} parent=0 // pred_region
    _
  $region17: #{mlp_layer2_forward.1} parent=0 // pred_fallthru
    _
  // Predicated region
  $region18: #{mlp_layer2_forward.1} parent=0 // pred_check
    _
  $region19: #{mlp_layer2_forward.1} parent=0 // pred_check_branch
    %256 = sbr.rel (0) target = $region21
  $region20: #{mlp_layer2_forward.1} parent=0 // pred_region
    _
  $region21: #{mlp_layer2_forward.1} parent=0 // pred_fallthru
    _

</llo_original>
